<compile_context>
chip_gen: v7x
topology: tpu7x:2x2x1
jax: 0.10.0
libtpu: 0.0.40
codegen_flags: <defaults>
</compile_context>

<pallas_src>
import functools

import jax
import jax.numpy as jnp
from jax.experimental import pallas as pl
from jax.experimental.pallas import tpu as pltpu

EPS = 1e-5


def _round_up(a, b):
    return (a + b - 1) // b * b


# ---------------------------------------------------------------------------
# Fused path: one grid step per channel tile, whole row extent resident.
# ---------------------------------------------------------------------------
def _bn_fused_kernel(x_ref, gamma_ref, beta_ref, o_ref, *, inv_n, eps):
    x = x_ref[...].astype(jnp.float32)                                # [N, bc]
    ones = jnp.ones((1, x.shape[0]), jnp.float32)
    # MXU row reductions (keeps the XLU/VALU slots free).
    s1 = jnp.dot(ones, x, preferred_element_type=jnp.float32)        # [1, bc]
    s2 = jnp.dot(ones, x * x, preferred_element_type=jnp.float32)    # [1, bc]
    mean = s1 * inv_n
    var = jnp.maximum(s2 * inv_n - mean * mean, 0.0)
    inv = jax.lax.rsqrt(var + eps)
    # Fold affine params into per-channel scale/shift (hoisted out of per-row math).
    scale = inv * gamma_ref[...].astype(jnp.float32)                  # [1, bc]
    shift = beta_ref[...].astype(jnp.float32) - mean * scale          # [1, bc]
    o_ref[...] = (x * scale + shift).astype(o_ref.dtype)


# ---------------------------------------------------------------------------
# Two-pass path (large T*B): pass 1 accumulates per-channel sum / sum(x^2),
# pass 2 applies the precomputed scale/shift.
# ---------------------------------------------------------------------------
def _bn_stats_kernel(x_ref, sum_ref, sumsq_ref):
    i = pl.program_id(1)                       # row-tile (reduction) axis, last in grid

    @pl.when(i == 0)
    def _():
        sum_ref[...] = jnp.zeros_like(sum_ref)
        sumsq_ref[...] = jnp.zeros_like(sumsq_ref)

    x = x_ref[...].astype(jnp.float32)                                # [bn, bc]
    ones = jnp.ones((1, x.shape[0]), jnp.float32)
    sum_ref[...] += jnp.dot(ones, x, preferred_element_type=jnp.float32)
    sumsq_ref[...] += jnp.dot(ones, x * x, preferred_element_type=jnp.float32)


def _bn_norm_kernel(x_ref, scale_ref, shift_ref, o_ref):
    y = x_ref[...].astype(jnp.float32) * scale_ref[...] + shift_ref[...]
    o_ref[...] = y.astype(o_ref.dtype)


# ---------------------------------------------------------------------------
# Wrapper
# ---------------------------------------------------------------------------
def batchnorm1d_tbc(x, gamma, beta, *, eps=EPS, two_pass=None,
                    block_rows=1024, block_cols=512):
    """x: [T, B, C] -> [T, B, C]; training-mode BatchNorm1d over (B, T)."""
    T, B, C = x.shape
    N = T * B
    dtype = x.dtype
    itemsize = jnp.dtype(dtype).itemsize

    # Lane-dense channel tiling (multiple of 128).
    bc = min(block_cols, _round_up(C, 128))
    c_pad = _round_up(C, bc)

    x2 = x.reshape(N, C)
    g2 = jnp.pad(gamma.astype(jnp.float32), (0, c_pad - C)).reshape(1, c_pad)
    b2 = jnp.pad(beta.astype(jnp.float32), (0, c_pad - C)).reshape(1, c_pad)

    # Estimated VMEM working set of the fused path per channel tile:
    # 2x in + 2x out double-buffered (input dtype) + ~3 f32 temporaries.
    fused_bytes = N * bc * (4 * itemsize + 3 * 4)
    vmem_limit = 32 * 1024 * 1024              # safe on v5e / v6e / v7x
    if two_pass is None:
        two_pass = fused_bytes > 20 * 1024 * 1024

    if not two_pass:
        # ---------------- fused single-pass kernel ----------------
        xp = jnp.pad(x2, ((0, 0), (0, c_pad - C)))
        kern = functools.partial(_bn_fused_kernel, inv_n=1.0 / N, eps=eps)
        out = pl.pallas_call(
            kern,
            out_shape=jax.ShapeDtypeStruct((N, c_pad), dtype),
            grid=(c_pad // bc,),
            in_specs=[
                pl.BlockSpec((N, bc), lambda j: (0, j)),
                pl.BlockSpec((1, bc), lambda j: (0, j)),
                pl.BlockSpec((1, bc), lambda j: (0, j)),
            ],
            out_specs=pl.BlockSpec((N, bc), lambda j: (0, j)),
            compiler_params=pltpu.CompilerParams(
                dimension_semantics=("parallel",),
                vmem_limit_bytes=vmem_limit,
            ),
            cost_estimate=pl.CostEstimate(
                flops=7 * N * c_pad,
                transcendentals=c_pad,
                bytes_accessed=2 * N * c_pad * itemsize,
            ),
        )(xp, g2, b2)
        return out[:, :C].reshape(T, B, C)

    # ---------------- two-pass kernels for large T*B ----------------
    bn = min(block_rows, _round_up(N, 8))
    n_pad = _round_up(N, bn)
    # Zero padding keeps the sums exact; divisor below is the true N.
    xp = jnp.pad(x2, ((0, n_pad - N), (0, c_pad - C)))

    sum_x, sum_xx = pl.pallas_call(
        _bn_stats_kernel,
        out_shape=(
            jax.ShapeDtypeStruct((1, c_pad), jnp.float32),
            jax.ShapeDtypeStruct((1, c_pad), jnp.float32),
        ),
        grid=(c_pad // bc, n_pad // bn),
        in_specs=[pl.BlockSpec((bn, bc), lambda j, i: (i, j))],
        out_specs=[
            pl.BlockSpec((1, bc), lambda j, i: (0, j)),
            pl.BlockSpec((1, bc), lambda j, i: (0, j)),
        ],
        compiler_params=pltpu.CompilerParams(
            dimension_semantics=("parallel", "arbitrary"),
            vmem_limit_bytes=vmem_limit,
        ),
        cost_estimate=pl.CostEstimate(
            flops=3 * n_pad * c_pad,
            transcendentals=0,
            bytes_accessed=n_pad * c_pad * itemsize,
        ),
    )(xp)

    mean = sum_x[0] / N                                         # [c_pad] f32
    var = jnp.maximum(sum_xx[0] / N - mean * mean, 0.0)
    inv = jax.lax.rsqrt(var + eps)
    scale = (inv * g2[0]).reshape(1, c_pad)
    shift = (b2[0] - mean * scale[0]).reshape(1, c_pad)

    out = pl.pallas_call(
        _bn_norm_kernel,
        out_shape=jax.ShapeDtypeStruct((n_pad, c_pad), dtype),
        grid=(c_pad // bc, n_pad // bn),
        in_specs=[
            pl.BlockSpec((bn, bc), lambda j, i: (i, j)),
            pl.BlockSpec((1, bc), lambda j, i: (0, j)),
            pl.BlockSpec((1, bc), lambda j, i: (0, j)),
        ],
        out_specs=pl.BlockSpec((bn, bc), lambda j, i: (i, j)),
        compiler_params=pltpu.CompilerParams(
            dimension_semantics=("parallel", "parallel"),
            vmem_limit_bytes=vmem_limit,
        ),
        cost_estimate=pl.CostEstimate(
            flops=2 * n_pad * c_pad,
            transcendentals=0,
            bytes_accessed=2 * n_pad * c_pad * itemsize,
        ),
    )(xp, scale, shift)
    return out[:N, :C].reshape(T, B, C)


# ---------------------------------------------------------------------------
# Pure-JAX reference mirroring torch.nn.BatchNorm1d (training mode).
# ---------------------------------------------------------------------------
def _reference(x, gamma, beta, eps=EPS):
    xf = x.astype(jnp.float32)
    mean = jnp.mean(xf, axis=(0, 1), keepdims=True)             # over T, B
    var = jnp.mean((xf - mean) ** 2, axis=(0, 1), keepdims=True)
    y = (xf - mean) * jax.lax.rsqrt(var + eps)
    return (y * gamma.reshape(1, 1, -1) + beta.reshape(1, 1, -1)).astype(x.dtype)


if __name__ == "__main__":
    key = jax.random.PRNGKey(0)

    # --- small shape, default nn.BatchNorm1d params (fused single-pass path) ---
    T, B, C = 8, 2, 32
    k1, k2 = jax.random.split(key)
    x = jax.random.normal(k1, (T, B, C), dtype=jnp.float32)
    gamma = jnp.ones((C,), dtype=jnp.float32)       # BatchNorm1d weight init
    beta = jnp.zeros((C,), dtype=jnp.float32)       # BatchNorm1d bias init

    out = jax.block_until_ready(batchnorm1d_tbc(x, gamma, beta))
    ref = _reference(x, gamma, beta)
    assert out.shape == (T, B, C)
    assert jnp.allclose(out, ref, atol=1e-4, rtol=1e-4), (
        f"fused path max err {jnp.max(jnp.abs(out - ref))}")

    # --- exercise the two-pass (tiled-stats) path with non-trivial affine ---
    T2, B2, C2 = 96, 3, 40
    k3, k4, k5 = jax.random.split(k2, 3)
    x2 = jax.random.normal(k3, (T2, B2, C2), dtype=jnp.float32) * 2.0 + 0.5
    gamma2 = jax.random.normal(k4, (C2,), dtype=jnp.float32)
    beta2 = jax.random.normal(k5, (C2,), dtype=jnp.float32)

    out2 = jax.block_until_ready(
        batchnorm1d_tbc(x2, gamma2, beta2, two_pass=True, block_rows=128))
    ref2 = _reference(x2, gamma2, beta2)
    assert out2.shape == (T2, B2, C2)
    assert jnp.allclose(out2, ref2, atol=1e-4, rtol=1e-4), (
        f"two-pass path max err {jnp.max(jnp.abs(out2 - ref2))}")

    print("KERNEL_OK")
</pallas_src>

<mosaic_0001>
module attributes {stable_mosaic.version = 11 : i64} {
  func.func @_bn_fused_kernel(%arg0: i32, %arg1: memref<16x128xf32, #tpu.memory_space<vmem>>, %arg2: memref<1x128xf32, #tpu.memory_space<vmem>>, %arg3: memref<1x128xf32, #tpu.memory_space<vmem>>, %arg4: memref<16x128xf32, #tpu.memory_space<vmem>>) attributes {dimension_semantics = [#tpu.dimension_semantics<parallel>], iteration_bounds = array<i64: 1>, scalar_prefetch = 0 : i64, scratch_operands = 0 : i64, tpu.core_type = #tpu.core_type<tc>, window_params = [{transform_indices = @transform_0, window_bounds = array<i64: 16, 128>}, {transform_indices = @transform_1, window_bounds = array<i64: 1, 128>}, {transform_indices = @transform_2, window_bounds = array<i64: 1, 128>}, {transform_indices = @transform_3, window_bounds = array<i64: 16, 128>}]} {
    %c0 = arith.constant 0 : index
    %c0_0 = arith.constant 0 : index
    %0 = vector.load %arg1[%c0, %c0_0] : memref<16x128xf32, #tpu.memory_space<vmem>>, vector<16x128xf32>
    %cst = arith.constant 1.000000e+00 : f32
    %1 = vector.broadcast %cst : f32 to vector<1x16xf32>
    %cst_1 = arith.constant dense<0.000000e+00> : vector<1x128xf32>
    %2 = tpu.matmul %1, %0, %cst_1 {dimension_numbers = #tpu.dot_dimension_numbers<[1], [0], [0], [1], [0, 0, 1, 1], [], []>} : vector<1x16xf32>, vector<16x128xf32>, vector<1x128xf32> -> vector<1x128xf32>
    %3 = arith.mulf %0, %0 : vector<16x128xf32>
    %cst_2 = arith.constant dense<0.000000e+00> : vector<1x128xf32>
    %4 = tpu.matmul %1, %3, %cst_2 {dimension_numbers = #tpu.dot_dimension_numbers<[1], [0], [0], [1], [0, 0, 1, 1], [], []>} : vector<1x16xf32>, vector<16x128xf32>, vector<1x128xf32> -> vector<1x128xf32>
    %cst_3 = arith.constant 6.250000e-02 : f32
    %5 = vector.broadcast %cst_3 : f32 to vector<1x128xf32>
    %6 = arith.mulf %2, %5 : vector<1x128xf32>
    %cst_4 = arith.constant 6.250000e-02 : f32
    %7 = vector.broadcast %cst_4 : f32 to vector<1x128xf32>
    %8 = arith.mulf %4, %7 : vector<1x128xf32>
    %9 = arith.mulf %6, %6 : vector<1x128xf32>
    %10 = arith.subf %8, %9 : vector<1x128xf32>
    %cst_5 = arith.constant 0.000000e+00 : f32
    %11 = vector.broadcast %cst_5 : f32 to vector<1x128xf32>
    %12 = arith.maximumf %10, %11 : vector<1x128xf32>
    %cst_6 = arith.constant 9.99999974E-6 : f32
    %13 = vector.broadcast %cst_6 : f32 to vector<1x128xf32>
    %14 = arith.addf %12, %13 : vector<1x128xf32>
    %15 = math.rsqrt %14 : vector<1x128xf32>
    %c0_7 = arith.constant 0 : index
    %c0_8 = arith.constant 0 : index
    %16 = vector.load %arg2[%c0_7, %c0_8] : memref<1x128xf32, #tpu.memory_space<vmem>>, vector<1x128xf32>
    %17 = arith.mulf %15, %16 : vector<1x128xf32>
    %c0_9 = arith.constant 0 : index
    %c0_10 = arith.constant 0 : index
    %18 = vector.load %arg3[%c0_9, %c0_10] : memref<1x128xf32, #tpu.memory_space<vmem>>, vector<1x128xf32>
    %19 = arith.mulf %6, %17 : vector<1x128xf32>
    %20 = arith.subf %18, %19 : vector<1x128xf32>
    %21 = vector.broadcast %17 : vector<1x128xf32> to vector<16x128xf32>
    %22 = arith.mulf %0, %21 : vector<16x128xf32>
    %23 = vector.broadcast %20 : vector<1x128xf32> to vector<16x128xf32>
    %24 = arith.addf %22, %23 : vector<16x128xf32>
    %c0_11 = arith.constant 0 : index
    %c0_12 = arith.constant 0 : index
    %25 = vector.load %arg4[%c0_11, %c0_12] : memref<16x128xf32, #tpu.memory_space<vmem>>, vector<16x128xf32>
    tpu.vector_store %arg4[%c0_11, %c0_12], %24 {strides = array<i32>} : memref<16x128xf32, #tpu.memory_space<vmem>>, vector<16x128xf32>,
    return
  }
  func.func @transform_0(%arg0: i32) -> (i32, i32) {
    %c0_i32 = arith.constant 0 : i32
    %c0_i32_0 = arith.constant 0 : i32
    return %c0_i32, %arg0 : i32, i32
  }
  func.func @transform_1(%arg0: i32) -> (i32, i32) {
    %c0_i32 = arith.constant 0 : i32
    %c0_i32_0 = arith.constant 0 : i32
    return %c0_i32, %arg0 : i32, i32
  }
  func.func @transform_2(%arg0: i32) -> (i32, i32) {
    %c0_i32 = arith.constant 0 : i32
    %c0_i32_0 = arith.constant 0 : i32
    return %c0_i32, %arg0 : i32, i32
  }
  func.func @transform_3(%arg0: i32) -> (i32, i32) {
    %c0_i32 = arith.constant 0 : i32
    %c0_i32_0 = arith.constant 0 : i32
    return %c0_i32, %arg0 : i32, i32
  }
}

</mosaic_0001>

<llo_original>
// kernel: tpu_custom_call.1
$region0: #{tpu_custom_call.1}
  #allocation0 [shape = 'u32[]', space=smem, size = 0x4, offset = 0x4, fixed_abs, tag = 'smem constant byte address 0x4 - core index']
  #allocation1 [shape = 'u32[144,128]{1,0:T(1,128)}', space=vmem, size = 0x12000, scoped, tag = 'internal scratch']
  %s0 = inlined_call_operand.hbm [shape: f32[16,128], index: 0, kind: input, shape index: {}]
  %s1 = inlined_call_operand.vmem [shape: f32[1,128], index: 1, kind: input, shape index: {}]
  %s2 = inlined_call_operand.vmem [shape: f32[1,128], index: 2, kind: input, shape index: {}]
  %s3 = inlined_call_operand.hbm [shape: f32[16,128], index: 3, kind: output, shape index: {}]
  %s4 = sld [smem:[#allocation0]]
  $region26: #{tpu_custom_call.1} parent=0
    _
  %s6 = ssub.s32 1, %s4
  %s7 = scalar_select 0, %s6, %s4
  $region1: #{tpu_custom_call.1} parent=0
    #allocation2 [shape = 'u8[8192]{0}', space=vmem, size = 0x2000, scoped, tag = 'input window, operand 0, single buffered']
    #allocation3 [shape = 's32[1]{0}', space=sflag, size = 0x4, scoped, tag = 'scoped memory for tpu_custom_call.1']
    #allocation4 [shape = 's32[1]{0}', space=sflag, size = 0x4, scoped, tag = 'scoped memory for tpu_custom_call.1']
    #allocation5 [shape = 'u8[8192]{0}', space=vmem, size = 0x2000, scoped, tag = 'output window, operand 0, single buffered']
    %8 = vsyncpa [#allocation3], 0
    %9 = vsyncpa [#allocation4], 0
    // Predicated region
    $region2: #{tpu_custom_call.1} parent=1 // pred_check
      _
    $region3: #{tpu_custom_call.1} parent=1 // pred_check_branch
      %11 = sbr.rel (0) target = $region5
    $region4: #{tpu_custom_call.1} parent=1 // pred_region
      %s13 = ssub.s32 256, 256
      %14 = vsyncadd [#allocation3], %s13
      %s15 = sshll.u32 [#allocation2], 4
      %s16 = int_to_ptr.vmem [resolvable:$true] %s15
      %21 = dma.hbm_to_vmem [thread:$0]  %s0, 256, %s16, [#allocation3], 128, 128, 8
    $region5: #{tpu_custom_call.1} parent=1 // pred_fallthru
      _
    // Predicated region
    $region6: #{tpu_custom_call.1} parent=1 // pred_check
      _
    $region7: #{tpu_custom_call.1} parent=1 // pred_check_branch
      %23 = sbr.rel (0) target = $region9
    $region8: #{tpu_custom_call.1} parent=1 // pred_region
      _
    $region9: #{tpu_custom_call.1} parent=1 // pred_fallthru
      _
    // Predicated region
    $region10: #{tpu_custom_call.1} parent=1 // pred_check
      _
    $region11: #{tpu_custom_call.1} parent=1 // pred_check_branch
      %25 = sbr.rel (0) target = $region13
    $region12: #{tpu_custom_call.1} parent=1 // pred_region
      _
    $region13: #{tpu_custom_call.1} parent=1 // pred_fallthru
      _
    // Predicated region
    $region14: #{tpu_custom_call.1} parent=1 // pred_check
      _
    $region15: #{tpu_custom_call.1} parent=1 // pred_check_branch
      %27 = sbr.rel (0) target = $region17
    $region16: #{tpu_custom_call.1} parent=1 // pred_region
      %28 = dma.done [#allocation3], 256
    $region17: #{tpu_custom_call.1} parent=1 // pred_fallthru
      _
    %v29 = vld [vmem:[#allocation2] sm:$0xff]
    %v30 = vld [vmem:[#allocation2 + $0x8] sm:$0xff]
    %vm31 = vcmask 130048
    %v33 = vsel %vm31, 1.0, 0
    %35 = vmatprep.subr.mxu0 0.0
    %36 = vmatpush1.msra.mxu0 %v29
    %37 = vmatprep.subr.mxu0 0.0
    %38 = vmatpush1.msra.mxu0 %v30
    %39 = vmatprep.subr.mxu0 0.0
    %40 = vmatpush1.msra.mxu0 0.0
    %41 = vmatprep.subr.mxu0 0.0
    %42 = vmatpush1.msra.mxu0 0.0
    %43 = vmatprep.subr.mxu0 0.0
    %44 = vmatpush1.msra.mxu0 0.0
    %45 = vmatprep.subr.mxu0 0.0
    %46 = vmatpush1.msra.mxu0 0.0
    %47 = vmatprep.subr.mxu0 0.0
    %48 = vmatpush1.msra.mxu0 0.0
    %49 = vmatprep.subr.mxu0 0.0
    %50 = vmatpush1.msra.mxu0 0.0
    %51 = vmatprep.subr.mxu0 0.0
    %52 = vmatpush1.msra.mxu0 0.0
    %53 = vmatprep.subr.mxu0 0.0
    %54 = vmatpush1.msra.mxu0 0.0
    %55 = vmatprep.subr.mxu0 0.0
    %56 = vmatpush1.msra.mxu0 0.0
    %57 = vmatprep.subr.mxu0 0.0
    %58 = vmatpush1.msra.mxu0 0.0
    %59 = vmatprep.subr.mxu0 0.0
    %60 = vmatpush1.msra.mxu0 0.0
    %61 = vmatprep.subr.mxu0 0.0
    %62 = vmatpush1.msra.mxu0 0.0
    %63 = vmatprep.subr.mxu0 0.0
    %64 = vmatpush1.msra.mxu0 0.0
    %65 = vmatprep.subr.mxu0 0.0
    %66 = vmatpush1.msra.mxu0 0.0
    %67 = vmatprep.subr.mxu0 0.0
    %68 = vmatpush1.msra.mxu0 0.0
    %69 = vmatprep.subr.mxu0 0.0
    %70 = vmatpush1.msra.mxu0 0.0
    %71 = vmatprep.subr.mxu0 0.0
    %72 = vmatpush1.msra.mxu0 0.0
    %73 = vmatprep.subr.mxu0 0.0
    %74 = vmatpush1.msra.mxu0 0.0
    %75 = vmatprep.subr.mxu0 0.0
    %76 = vmatpush1.msra.mxu0 0.0
    %77 = vmatprep.subr.mxu0 0.0
    %78 = vmatpush1.msra.mxu0 0.0
    %79 = vmatprep.subr.mxu0 0.0
    %80 = vmatpush1.msra.mxu0 0.0
    %81 = vmatprep.subr.mxu0 0.0
    %82 = vmatpush1.msra.mxu0 0.0
    %83 = vmatprep.subr.mxu0 0.0
    %84 = vmatpush1.msra.mxu0 0.0
    %85 = vmatprep.subr.mxu0 0.0
    %86 = vmatpush1.msra.mxu0 0.0
    %87 = vmatprep.subr.mxu0 0.0
    %88 = vmatpush1.msra.mxu0 0.0
    %89 = vmatprep.subr.mxu0 0.0
    %90 = vmatpush1.msra.mxu0 0.0
    %91 = vmatprep.subr.mxu0 0.0
    %92 = vmatpush1.msra.mxu0 0.0
    %93 = vmatprep.subr.mxu0 0.0
    %94 = vmatpush1.msra.mxu0 0.0
    %95 = vmatprep.subr.mxu0 0.0
    %96 = vmatpush1.msra.mxu0 0.0
    %97 = vmatprep.subr.mxu0 0.0
    %98 = vmatpush1.msra.mxu0 0.0
    %99 = vmatprep.mubr.f32.mxu0 0.0
    %100 = vmatmul.mubr.f32.gmra.mrb[0].mxu0 %v33
    %v101 = vpop.f32.mrb[0].mxu0
    %v102 = vadd.f32 0.0, %v101
    %v103 = vpop.f32.mrb[0].mxu0
    %104 = vdwg.mxu0
    %v105 = vmul.f32 %v29, %v29
    %v106 = vmul.f32 %v30, %v30
    %107 = vmatprep.subr.mxu0 0.0
    %108 = vmatpush1.msra.mxu0 %v105
    %109 = vmatprep.subr.mxu0 0.0
    %110 = vmatpush1.msra.mxu0 %v106
    %111 = vmatprep.subr.mxu0 0.0
    %112 = vmatpush1.msra.mxu0 0.0
    %113 = vmatprep.subr.mxu0 0.0
    %114 = vmatpush1.msra.mxu0 0.0
    %115 = vmatprep.subr.mxu0 0.0
    %116 = vmatpush1.msra.mxu0 0.0
    %117 = vmatprep.subr.mxu0 0.0
    %118 = vmatpush1.msra.mxu0 0.0
    %119 = vmatprep.subr.mxu0 0.0
    %120 = vmatpush1.msra.mxu0 0.0
    %121 = vmatprep.subr.mxu0 0.0
    %122 = vmatpush1.msra.mxu0 0.0
    %123 = vmatprep.subr.mxu0 0.0
    %124 = vmatpush1.msra.mxu0 0.0
    %125 = vmatprep.subr.mxu0 0.0
    %126 = vmatpush1.msra.mxu0 0.0
    %127 = vmatprep.subr.mxu0 0.0
    %128 = vmatpush1.msra.mxu0 0.0
    %129 = vmatprep.subr.mxu0 0.0
    %130 = vmatpush1.msra.mxu0 0.0
    %131 = vmatprep.subr.mxu0 0.0
    %132 = vmatpush1.msra.mxu0 0.0
    %133 = vmatprep.subr.mxu0 0.0
    %134 = vmatpush1.msra.mxu0 0.0
    %135 = vmatprep.subr.mxu0 0.0
    %136 = vmatpush1.msra.mxu0 0.0
    %137 = vmatprep.subr.mxu0 0.0
    %138 = vmatpush1.msra.mxu0 0.0
    %139 = vmatprep.subr.mxu0 0.0
    %140 = vmatpush1.msra.mxu0 0.0
    %141 = vmatprep.subr.mxu0 0.0
    %142 = vmatpush1.msra.mxu0 0.0
    %143 = vmatprep.subr.mxu0 0.0
    %144 = vmatpush1.msra.mxu0 0.0
    %145 = vmatprep.subr.mxu0 0.0
    %146 = vmatpush1.msra.mxu0 0.0
    %147 = vmatprep.subr.mxu0 0.0
    %148 = vmatpush1.msra.mxu0 0.0
    %149 = vmatprep.subr.mxu0 0.0
    %150 = vmatpush1.msra.mxu0 0.0
    %151 = vmatprep.subr.mxu0 0.0
    %152 = vmatpush1.msra.mxu0 0.0
    %153 = vmatprep.subr.mxu0 0.0
    %154 = vmatpush1.msra.mxu0 0.0
    %155 = vmatprep.subr.mxu0 0.0
    %156 = vmatpush1.msra.mxu0 0.0
    %157 = vmatprep.subr.mxu0 0.0
    %158 = vmatpush1.msra.mxu0 0.0
    %159 = vmatprep.subr.mxu0 0.0
    %160 = vmatpush1.msra.mxu0 0.0
    %161 = vmatprep.subr.mxu0 0.0
    %162 = vmatpush1.msra.mxu0 0.0
    %163 = vmatprep.subr.mxu0 0.0
    %164 = vmatpush1.msra.mxu0 0.0
    %165 = vmatprep.subr.mxu0 0.0
    %166 = vmatpush1.msra.mxu0 0.0
    %167 = vmatprep.subr.mxu0 0.0
    %168 = vmatpush1.msra.mxu0 0.0
    %169 = vmatprep.subr.mxu0 0.0
    %170 = vmatpush1.msra.mxu0 0.0
    %171 = vmatprep.mubr.f32.mxu0 0.0
    %172 = vmatmul.mubr.f32.gmra.mrb[0].mxu0 %v33
    %v173 = vpop.f32.mrb[0].mxu0
    %v174 = vadd.f32 0.0, %v173
    %v175 = vpop.f32.mrb[0].mxu0
    %176 = vdwg.mxu0
    %v177 = vmul.f32 %v102, 0.0625
    %v178 = vmul.f32 %v174, 0.0625
    %v179 = vmul.f32 %v177, %v177
    %v180 = vsub.f32 %v178, %v179
    %v181 = vmax.f32 %v180, 0.0
    %v182 = vadd.f32 %v181, 1e-05
    %v183 = vrsqrt.pop %v182
    %v184 = vld [vmem:[%s1] sm:$0x1]
    %v185 = vmul.f32 %v183, %v184
    %v186 = vld [vmem:[%s2] sm:$0x1]
    %v187 = vmul.f32 %v177, %v185
    %v188 = vsub.f32 %v186, %v187
    %v189 = vlaneseq
    %v190 = vshrl.u32 %v189, 7
    %v191 = vsub.s32 0, %v190
    %v192 = vrot.slane %v185, %v191
    %v193 = vmul.f32 %v29, %v192
    %v194 = vmul.f32 %v30, %v192
    %v196 = vlaneseq
    %v197 = vshrl.u32 %v196, 7
    %v198 = vsub.s32 0, %v197
    %v199 = vrot.slane %v188, %v198
    %v201 = vadd.f32 %v193, %v199
    %v202 = vadd.f32 %v194, %v199
    %203 = vst [vmem:[#allocation5] sm:$0xff] %v201
    %204 = vst [vmem:[#allocation5 + $0x8] sm:$0xff] %v202
    // Predicated region
    $region18: #{tpu_custom_call.1} parent=1 // pred_check
      _
    $region19: #{tpu_custom_call.1} parent=1 // pred_check_branch
      %206 = sbr.rel (0) target = $region21
    $region20: #{tpu_custom_call.1} parent=1 // pred_region
      %s208 = ssub.s32 256, 256
      %209 = vsyncadd [#allocation4], %s208
      %s210 = sshll.u32 [#allocation5], 4
      %s211 = int_to_ptr.vmem [resolvable:$true] %s210
      %216 = dma.vmem_to_hbm [thread:$0]  %s211, 256, %s3, [#allocation4], 128, 128, 8
    $region21: #{tpu_custom_call.1} parent=1 // pred_fallthru
      _
    // Predicated region
    $region22: #{tpu_custom_call.1} parent=1 // pred_check
      _
    $region23: #{tpu_custom_call.1} parent=1 // pred_check_branch
      %218 = sbr.rel (0) target = $region25
    $region24: #{tpu_custom_call.1} parent=1 // pred_region
      %219 = dma.done [#allocation4], 256
    $region25: #{tpu_custom_call.1} parent=1 // pred_fallthru
      _
    %220 = vsyncpa [#allocation3], 1
    %221 = vsyncpa [#allocation4], 1

</llo_original>
